<compile_context>
chip_gen: v6e
topology: v6e:2x2x1
jax: 0.10.0
libtpu: 0.0.40
codegen_flags: <defaults>
</compile_context>

<pallas_src>
import functools

import jax
import jax.numpy as jnp
from jax import lax
from jax.experimental import pallas as pl
from jax.experimental.pallas import tpu as pltpu

_LANES = 128
_ALPHAS = (0.3, 0.4, 0.3)


def _loss_kernel(x_ref, y_ref, z_ref, t_ref, o_ref, *,
                 n, block_rows, needs_mask, single_block):
    # Upcast in-kernel (intentional for bf16 inputs: v5e VPU/EUP have no bf16
    # path; a no-op for f32 inputs).
    t = t_ref[...].astype(jnp.float32)              # (block_rows, 128)

    def bce(p_ref):
        p = p_ref[...].astype(jnp.float32)
        # PyTorch nn.BCELoss clamps the log terms at -100 for stability.
        log_p = jnp.maximum(jnp.log(p), -100.0)
        log_1mp = jnp.maximum(jnp.log(1.0 - p), -100.0)
        return -(t * log_p + (1.0 - t) * log_1mp)

    a1, a2, a3 = _ALPHAS
    # mean(a1*L1 + a2*L2 + a3*L3) over scalar means == mean over elements of
    # the weighted per-element BCE (all heads have the same element count).
    # TODO(synk): if labels were guaranteed binary {0,1}, a single clamped log
    # per head (p_sel = where(t>0.5, p, 1-p)) would halve EUP work; skipped to
    # keep exact semantics for soft labels.
    weighted = a1 * bce(x_ref) + a2 * bce(y_ref) + a3 * bce(z_ref)

    def write(w):
        if single_block:
            o_ref[...] = jnp.sum(w, axis=0, keepdims=True)          # (1, 128)
        else:
            # block_rows is a multiple of 8 here; reshape aligns with (8,128)
            # tiles, reduce over leading axis is plain vreg adds (no XLU).
            o_ref[...] = jnp.sum(w.reshape(-1, 8, _LANES), axis=0)  # (8, 128)

    if needs_mask:  # static: only emitted when padding / partial blocks exist
        b = pl.program_id(0)
        nb = pl.num_programs(0)

        def masked():
            grow = b * block_rows + lax.broadcasted_iota(
                jnp.int32, weighted.shape, 0)                 # global row idx
            col = lax.broadcasted_iota(jnp.int32, weighted.shape, 1)
            full_rows = n // _LANES
            rem = n % _LANES
            # 2-level mask (no flat-index multiply -> no int32 overflow).
            valid = (grow < full_rows) | ((grow == full_rows) & (col < rem))
            return jnp.where(valid, weighted, 0.0)

        if single_block:
            write(masked())          # only one block; no branch needed
        else:
            @pl.when(b == nb - 1)    # only the last block has invalid elements
            def _():
                write(masked())

            @pl.when(b < nb - 1)
            def _():
                write(weighted)
    else:
        write(weighted)


def weighted_bce_loss(x, y, z, label, *, max_block_rows=2048):
    """Equivalent of the PyTorch `loss` module's forward pass."""
    assert max_block_rows > 0 and max_block_rows % 8 == 0
    n = x.shape[0]

    def to_tiles(a, pad_value):
        flat = a.reshape(-1)
        pad = (-n) % _LANES
        if pad:  # only materializes a copy when N isn't lane-aligned
            flat = jnp.pad(flat, (0, pad), constant_values=pad_value)
        return flat.reshape(-1, _LANES)   # free reshape when no pad

    xt = to_tiles(x, 0.5)   # 0.5 keeps (masked-out) BCE finite
    yt = to_tiles(y, 0.5)
    zt = to_tiles(z, 0.5)
    tt = to_tiles(label, 0.0)

    rows = xt.shape[0]
    single_block = rows <= max_block_rows
    # single-block: block == full array dims (always a legal BlockSpec);
    # multi-block: block_rows is a multiple of 8 (legal, partial last block
    # handled by Pallas + in-kernel mask).
    block_rows = rows if single_block else max_block_rows
    num_blocks = pl.cdiv(rows, block_rows)
    needs_mask = (num_blocks * block_rows * _LANES) != n

    out_rows = 1 if single_block else num_blocks * 8
    out_block = (1, _LANES) if single_block else (8, _LANES)

    kernel = functools.partial(
        _loss_kernel, n=n, block_rows=block_rows,
        needs_mask=needs_mask, single_block=single_block)

    partials = pl.pallas_call(
        kernel,
        out_shape=jax.ShapeDtypeStruct((out_rows, _LANES), jnp.float32),
        grid=(num_blocks,),
        in_specs=[pl.BlockSpec((block_rows, _LANES), lambda i: (i, 0))
                  for _ in range(4)],
        out_specs=pl.BlockSpec(out_block, lambda i: (i, 0)),
        compiler_params=pltpu.CompilerParams(
            dimension_semantics=("parallel",),
        ),
    )(xt, yt, zt, tt)

    # Tiny final reduction + mean (per-block partials keep the grid parallel
    # and improve summation accuracy for large N).
    return jnp.sum(partials) / n


def _ref_loss(x, y, z, label):
    def ref_bce(p, t):
        lp = jnp.maximum(jnp.log(p), -100.0)
        l1mp = jnp.maximum(jnp.log(1.0 - p), -100.0)
        return jnp.mean(-(t * lp + (1.0 - t) * l1mp))

    t = label.reshape(-1, 1)
    return 0.3 * ref_bce(x, t) + 0.4 * ref_bce(y, t) + 0.3 * ref_bce(z, t)


if __name__ == "__main__":
    key = jax.random.PRNGKey(0)
    kx, ky, kz, kl = jax.random.split(key, 4)

    def make_inputs(n):
        # Predictions must be probabilities in (0, 1): squash random normals.
        x = jax.nn.sigmoid(jax.random.normal(kx, (n, 1), dtype=jnp.float32))
        y = jax.nn.sigmoid(jax.random.normal(ky, (n, 1), dtype=jnp.float32))
        z = jax.nn.sigmoid(jax.random.normal(kz, (n, 1), dtype=jnp.float32))
        label = (jax.random.uniform(kl, (n,)) > 0.5).astype(jnp.float32)
        return x, y, z, label

    # 1) Lane-aligned, single block: no pad, no mask emitted.
    x, y, z, label = make_inputs(128)
    result = weighted_bce_loss(x, y, z, label)
    jax.block_until_ready(result)
    ref = _ref_loss(x, y, z, label)
    assert jnp.allclose(result, ref, atol=1e-5), (result, ref)

    # 2) Lane-unaligned: exercises tail pad + in-kernel mask.
    x2, y2, z2, l2 = make_inputs(200)
    r2 = weighted_bce_loss(x2, y2, z2, l2)
    jax.block_until_ready(r2)
    ref2 = _ref_loss(x2, y2, z2, l2)
    assert jnp.allclose(r2, ref2, atol=1e-5), (r2, ref2)

    # 3) Multi-block "parallel" path (small block override), mask on last block.
    x3, y3, z3, l3 = make_inputs(3000)
    r3 = weighted_bce_loss(x3, y3, z3, l3, max_block_rows=8)
    jax.block_until_ready(r3)
    ref3 = _ref_loss(x3, y3, z3, l3)
    assert jnp.allclose(r3, ref3, atol=1e-5), (r3, ref3)

    # 4) Multi-block with a partial last input block (rows % block_rows != 0).
    x4, y4, z4, l4 = make_inputs(2560)
    r4 = weighted_bce_loss(x4, y4, z4, l4, max_block_rows=8)
    jax.block_until_ready(r4)
    ref4 = _ref_loss(x4, y4, z4, l4)
    assert jnp.allclose(r4, ref4, atol=1e-5), (r4, ref4)

    print("KERNEL_OK")
</pallas_src>

<mosaic_0001>
module attributes {stable_mosaic.version = 11 : i64} {
  func.func @_loss_kernel(%arg0: i32, %arg1: memref<1x128xf32, #tpu.memory_space<vmem>>, %arg2: memref<1x128xf32, #tpu.memory_space<vmem>>, %arg3: memref<1x128xf32, #tpu.memory_space<vmem>>, %arg4: memref<1x128xf32, #tpu.memory_space<vmem>>, %arg5: memref<1x128xf32, #tpu.memory_space<vmem>>) attributes {dimension_semantics = [#tpu.dimension_semantics<parallel>], iteration_bounds = array<i64: 1>, scalar_prefetch = 0 : i64, scratch_operands = 0 : i64, tpu.core_type = #tpu.core_type<tc>, window_params = [{transform_indices = @transform_0, window_bounds = array<i64: 1, 128>}, {transform_indices = @transform_1, window_bounds = array<i64: 1, 128>}, {transform_indices = @transform_2, window_bounds = array<i64: 1, 128>}, {transform_indices = @transform_3, window_bounds = array<i64: 1, 128>}, {transform_indices = @transform_4, window_bounds = array<i64: 1, 128>}]} {
    %c0 = arith.constant 0 : index
    %c0_0 = arith.constant 0 : index
    %0 = vector.load %arg4[%c0, %c0_0] : memref<1x128xf32, #tpu.memory_space<vmem>>, vector<1x128xf32>
    %c0_1 = arith.constant 0 : index
    %c0_2 = arith.constant 0 : index
    %1 = vector.load %arg1[%c0_1, %c0_2] : memref<1x128xf32, #tpu.memory_space<vmem>>, vector<1x128xf32>
    %2 = math.log %1 : vector<1x128xf32>
    %cst = arith.constant -1.000000e+02 : f32
    %3 = vector.broadcast %cst : f32 to vector<1x128xf32>
    %4 = arith.maximumf %2, %3 : vector<1x128xf32>
    %cst_3 = arith.constant 1.000000e+00 : f32
    %5 = vector.broadcast %cst_3 : f32 to vector<1x128xf32>
    %6 = arith.subf %5, %1 : vector<1x128xf32>
    %7 = math.log %6 : vector<1x128xf32>
    %cst_4 = arith.constant -1.000000e+02 : f32
    %8 = vector.broadcast %cst_4 : f32 to vector<1x128xf32>
    %9 = arith.maximumf %7, %8 : vector<1x128xf32>
    %10 = arith.mulf %0, %4 : vector<1x128xf32>
    %cst_5 = arith.constant 1.000000e+00 : f32
    %11 = vector.broadcast %cst_5 : f32 to vector<1x128xf32>
    %12 = arith.subf %11, %0 : vector<1x128xf32>
    %13 = arith.mulf %12, %9 : vector<1x128xf32>
    %14 = arith.addf %10, %13 : vector<1x128xf32>
    %cst_6 = arith.constant 0.000000e+00 : f32
    %15 = vector.broadcast %cst_6 : f32 to vector<1x128xf32>
    %16 = arith.subf %15, %14 : vector<1x128xf32>
    %cst_7 = arith.constant 3.000000e-01 : f32
    %17 = vector.broadcast %cst_7 : f32 to vector<1x128xf32>
    %18 = arith.mulf %17, %16 : vector<1x128xf32>
    %c0_8 = arith.constant 0 : index
    %c0_9 = arith.constant 0 : index
    %19 = vector.load %arg2[%c0_8, %c0_9] : memref<1x128xf32, #tpu.memory_space<vmem>>, vector<1x128xf32>
    %20 = math.log %19 : vector<1x128xf32>
    %cst_10 = arith.constant -1.000000e+02 : f32
    %21 = vector.broadcast %cst_10 : f32 to vector<1x128xf32>
    %22 = arith.maximumf %20, %21 : vector<1x128xf32>
    %cst_11 = arith.constant 1.000000e+00 : f32
    %23 = vector.broadcast %cst_11 : f32 to vector<1x128xf32>
    %24 = arith.subf %23, %19 : vector<1x128xf32>
    %25 = math.log %24 : vector<1x128xf32>
    %cst_12 = arith.constant -1.000000e+02 : f32
    %26 = vector.broadcast %cst_12 : f32 to vector<1x128xf32>
    %27 = arith.maximumf %25, %26 : vector<1x128xf32>
    %28 = arith.mulf %0, %22 : vector<1x128xf32>
    %cst_13 = arith.constant 1.000000e+00 : f32
    %29 = vector.broadcast %cst_13 : f32 to vector<1x128xf32>
    %30 = arith.subf %29, %0 : vector<1x128xf32>
    %31 = arith.mulf %30, %27 : vector<1x128xf32>
    %32 = arith.addf %28, %31 : vector<1x128xf32>
    %cst_14 = arith.constant 0.000000e+00 : f32
    %33 = vector.broadcast %cst_14 : f32 to vector<1x128xf32>
    %34 = arith.subf %33, %32 : vector<1x128xf32>
    %cst_15 = arith.constant 4.000000e-01 : f32
    %35 = vector.broadcast %cst_15 : f32 to vector<1x128xf32>
    %36 = arith.mulf %35, %34 : vector<1x128xf32>
    %37 = arith.addf %18, %36 : vector<1x128xf32>
    %c0_16 = arith.constant 0 : index
    %c0_17 = arith.constant 0 : index
    %38 = vector.load %arg3[%c0_16, %c0_17] : memref<1x128xf32, #tpu.memory_space<vmem>>, vector<1x128xf32>
    %39 = math.log %38 : vector<1x128xf32>
    %cst_18 = arith.constant -1.000000e+02 : f32
    %40 = vector.broadcast %cst_18 : f32 to vector<1x128xf32>
    %41 = arith.maximumf %39, %40 : vector<1x128xf32>
    %cst_19 = arith.constant 1.000000e+00 : f32
    %42 = vector.broadcast %cst_19 : f32 to vector<1x128xf32>
    %43 = arith.subf %42, %38 : vector<1x128xf32>
    %44 = math.log %43 : vector<1x128xf32>
    %cst_20 = arith.constant -1.000000e+02 : f32
    %45 = vector.broadcast %cst_20 : f32 to vector<1x128xf32>
    %46 = arith.maximumf %44, %45 : vector<1x128xf32>
    %47 = arith.mulf %0, %41 : vector<1x128xf32>
    %cst_21 = arith.constant 1.000000e+00 : f32
    %48 = vector.broadcast %cst_21 : f32 to vector<1x128xf32>
    %49 = arith.subf %48, %0 : vector<1x128xf32>
    %50 = arith.mulf %49, %46 : vector<1x128xf32>
    %51 = arith.addf %47, %50 : vector<1x128xf32>
    %cst_22 = arith.constant 0.000000e+00 : f32
    %52 = vector.broadcast %cst_22 : f32 to vector<1x128xf32>
    %53 = arith.subf %52, %51 : vector<1x128xf32>
    %cst_23 = arith.constant 3.000000e-01 : f32
    %54 = vector.broadcast %cst_23 : f32 to vector<1x128xf32>
    %55 = arith.mulf %54, %53 : vector<1x128xf32>
    %56 = arith.addf %37, %55 : vector<1x128xf32>
    %cst_24 = arith.constant dense<0.000000e+00> : vector<128xf32>
    %57 = vector.multi_reduction <add>, %56, %cst_24 [0] : vector<1x128xf32> to vector<128xf32>
    %58 = vector.shape_cast %57 : vector<128xf32> to vector<1x128xf32>
    %c0_25 = arith.constant 0 : index
    %c0_26 = arith.constant 0 : index
    %59 = vector.load %arg5[%c0_25, %c0_26] : memref<1x128xf32, #tpu.memory_space<vmem>>, vector<1x128xf32>
    tpu.vector_store %arg5[%c0_25, %c0_26], %58 {strides = array<i32>} : memref<1x128xf32, #tpu.memory_space<vmem>>, vector<1x128xf32>,
    return
  }
  func.func @transform_0(%arg0: i32) -> (i32, i32) {
    %c0_i32 = arith.constant 0 : i32
    %c0_i32_0 = arith.constant 0 : i32
    return %arg0, %c0_i32 : i32, i32
  }
  func.func @transform_1(%arg0: i32) -> (i32, i32) {
    %c0_i32 = arith.constant 0 : i32
    %c0_i32_0 = arith.constant 0 : i32
    return %arg0, %c0_i32 : i32, i32
  }
  func.func @transform_2(%arg0: i32) -> (i32, i32) {
    %c0_i32 = arith.constant 0 : i32
    %c0_i32_0 = arith.constant 0 : i32
    return %arg0, %c0_i32 : i32, i32
  }
  func.func @transform_3(%arg0: i32) -> (i32, i32) {
    %c0_i32 = arith.constant 0 : i32
    %c0_i32_0 = arith.constant 0 : i32
    return %arg0, %c0_i32 : i32, i32
  }
  func.func @transform_4(%arg0: i32) -> (i32, i32) {
    %c0_i32 = arith.constant 0 : i32
    %c0_i32_0 = arith.constant 0 : i32
    return %arg0, %c0_i32 : i32, i32
  }
}

</mosaic_0001>

<llo_original>
// kernel: tpu_custom_call.1
$region0: #{tpu_custom_call.1}
  #allocation0 [shape = 'u32[]', space=smem, size = 0x4, offset = 0x4, fixed_abs, tag = 'smem constant byte address 0x4 - core index']
  #allocation1 [shape = 'u32[144,128]{1,0:T(1,128)}', space=vmem, size = 0x12000, scoped, tag = 'internal scratch']
  %s0 = inlined_call_operand.hbm [shape: f32[1,128], index: 0, kind: input, shape index: {}]
  %s1 = inlined_call_operand.vmem [shape: f32[1,128], index: 1, kind: input, shape index: {}]
  %s2 = inlined_call_operand.vmem [shape: f32[1,128], index: 2, kind: input, shape index: {}]
  %s3 = inlined_call_operand.vmem [shape: f32[1,128], index: 3, kind: input, shape index: {}]
  %s4 = inlined_call_operand.hbm [shape: f32[1,128], index: 4, kind: output, shape index: {}]
  %s5 = sld [smem:[#allocation0]]
  $region30: #{tpu_custom_call.1} parent=0
    _
  %s7 = ssub.s32 1, %s5
  %s8 = scalar_select 0, %s7, %s5
  $region1: #{tpu_custom_call.1} parent=0
    #allocation2 [shape = 'u8[512]{0}', space=vmem, size = 0x400, scoped, tag = 'input window, operand 0, single buffered']
    #allocation3 [shape = 's32[1]{0}', space=sflag, size = 0x4, scoped, tag = 'scoped memory for tpu_custom_call.1']
    #allocation4 [shape = 's32[1]{0}', space=sflag, size = 0x4, scoped, tag = 'scoped memory for tpu_custom_call.1']
    #allocation5 [shape = 'u8[512]{0}', space=vmem, size = 0x400, scoped, tag = 'output window, operand 0, single buffered']
    %9 = vsyncpa [#allocation3], 0
    %10 = vsyncpa [#allocation4], 0
    // Predicated region
    $region2: #{tpu_custom_call.1} parent=1 // pred_check
      _
    $region3: #{tpu_custom_call.1} parent=1 // pred_check_branch
      %12 = sbr.rel (0) target = $region5
    $region4: #{tpu_custom_call.1} parent=1 // pred_region
      %s14 = ssub.s32 16, 16
      %15 = vsyncadd [#allocation3], %s14
      %s17 = sshll.u32 [#allocation2], 4
      %s18 = int_to_ptr.vmem [resolvable:$true] %s17
      %20 = dma.hbm_to_vmem [thread:$0]  %s0, 16, %s18, [#allocation3]
    $region5: #{tpu_custom_call.1} parent=1 // pred_fallthru
      _
    // Predicated region
    $region6: #{tpu_custom_call.1} parent=1 // pred_check
      _
    $region7: #{tpu_custom_call.1} parent=1 // pred_check_branch
      %22 = sbr.rel (0) target = $region9
    $region8: #{tpu_custom_call.1} parent=1 // pred_region
      _
    $region9: #{tpu_custom_call.1} parent=1 // pred_fallthru
      _
    // Predicated region
    $region10: #{tpu_custom_call.1} parent=1 // pred_check
      _
    $region11: #{tpu_custom_call.1} parent=1 // pred_check_branch
      %24 = sbr.rel (0) target = $region13
    $region12: #{tpu_custom_call.1} parent=1 // pred_region
      _
    $region13: #{tpu_custom_call.1} parent=1 // pred_fallthru
      _
    // Predicated region
    $region14: #{tpu_custom_call.1} parent=1 // pred_check
      _
    $region15: #{tpu_custom_call.1} parent=1 // pred_check_branch
      %26 = sbr.rel (0) target = $region17
    $region16: #{tpu_custom_call.1} parent=1 // pred_region
      _
    $region17: #{tpu_custom_call.1} parent=1 // pred_fallthru
      _
    // Predicated region
    $region18: #{tpu_custom_call.1} parent=1 // pred_check
      _
    $region19: #{tpu_custom_call.1} parent=1 // pred_check_branch
      %28 = sbr.rel (0) target = $region21
    $region20: #{tpu_custom_call.1} parent=1 // pred_region
      %29 = dma.done [#allocation3], 16
    $region21: #{tpu_custom_call.1} parent=1 // pred_fallthru
      _
    %v30 = vld [vmem:[%s3] sm:$0x1]
    %v31 = vld [vmem:[#allocation2] sm:$0x1]
    %v32 = vlog2.pop %v31
    %v33 = vmul.f32 %v32, 0.6931472
    %v34 = vmax.f32 %v33, -100.0
    %v35 = vsub.f32 1.0, %v31
    %v36 = vlog2.pop %v35
    %v37 = vmul.f32 %v36, 0.6931472
    %v38 = vmax.f32 %v37, -100.0
    %v39 = vmul.f32 %v30, %v34
    %v40 = vsub.f32 1.0, %v30
    %v41 = vmul.f32 %v40, %v38
    %v42 = vadd.f32 %v39, %v41
    %v43 = vsub.f32 0.0, %v42
    %v44 = vmul.f32 %v43, 0.3
    %v45 = vld [vmem:[%s1] sm:$0x1]
    %v46 = vlog2.pop %v45
    %v47 = vmul.f32 %v46, 0.6931472
    %v48 = vmax.f32 %v47, -100.0
    %v49 = vsub.f32 1.0, %v45
    %v50 = vlog2.pop %v49
    %v51 = vmul.f32 %v50, 0.6931472
    %v52 = vmax.f32 %v51, -100.0
    %v53 = vmul.f32 %v30, %v48
    %v54 = vmul.f32 %v40, %v52
    %v55 = vadd.f32 %v53, %v54
    %v56 = vsub.f32 0.0, %v55
    %v57 = vmul.f32 %v56, 0.4
    %v58 = vadd.f32 %v44, %v57
    %v59 = vld [vmem:[%s2] sm:$0x1]
    %v60 = vlog2.pop %v59
    %v61 = vmul.f32 %v60, 0.6931472
    %v62 = vmax.f32 %v61, -100.0
    %v63 = vsub.f32 1.0, %v59
    %v64 = vlog2.pop %v63
    %v65 = vmul.f32 %v64, 0.6931472
    %v66 = vmax.f32 %v65, -100.0
    %v67 = vmul.f32 %v30, %v62
    %v68 = vmul.f32 %v40, %v66
    %v69 = vadd.f32 %v67, %v68
    %v70 = vsub.f32 0.0, %v69
    %v71 = vmul.f32 %v70, 0.3
    %v72 = vadd.f32 %v58, %v71
    %v73 = vadd.f32 %v72, 0.0
    %74 = vst [vmem:[#allocation5] sm:$0x1] %v73
    // Predicated region
    $region22: #{tpu_custom_call.1} parent=1 // pred_check
      _
    $region23: #{tpu_custom_call.1} parent=1 // pred_check_branch
      %76 = sbr.rel (0) target = $region25
    $region24: #{tpu_custom_call.1} parent=1 // pred_region
      %s78 = ssub.s32 16, 16
      %79 = vsyncadd [#allocation4], %s78
      %s81 = sshll.u32 [#allocation5], 4
      %s82 = int_to_ptr.vmem [resolvable:$true] %s81
      %84 = dma.vmem_to_hbm [thread:$0]  %s82, 16, %s4, [#allocation4]
    $region25: #{tpu_custom_call.1} parent=1 // pred_fallthru
      _
    // Predicated region
    $region26: #{tpu_custom_call.1} parent=1 // pred_check
      _
    $region27: #{tpu_custom_call.1} parent=1 // pred_check_branch
      %86 = sbr.rel (0) target = $region29
    $region28: #{tpu_custom_call.1} parent=1 // pred_region
      %87 = dma.done [#allocation4], 16
    $region29: #{tpu_custom_call.1} parent=1 // pred_fallthru
      _
    %88 = vsyncpa [#allocation3], 1
    %89 = vsyncpa [#allocation4], 1

</llo_original>
